<compile_context>
chip_gen: v5e
topology: v5e:2x2
jax: 0.10.0
libtpu: 0.0.40
codegen_flags: <defaults>
</compile_context>

<pallas_src>
import jax
import jax.numpy as jnp
import numpy as np
from jax import lax
from jax.experimental import pallas as pl
from jax.experimental.pallas import tpu as pltpu


def critic1_kernel(s_ref, a_ref, w1s_ref, w1a_ref, w2_ref, w3_ref, b_ref,
                   out_ref):
    """One batch tile.

    Inputs arrive batch-major (TB, feat); all intermediates are feature-major
    (feat, TB) so the batch rides the 128-wide lane dimension (lane-dense vregs
    and MXU passes).  The small (ACT, TB) result is transposed in-kernel so the
    kernel output is batch-major (TB, ACT) and the wrapper needs no transpose.
    """
    hid = w2_ref.shape[0]
    act_dim = w3_ref.shape[0]

    # Packed biases: column 0 = b1, 1 = b2, 2 = b3 (zero-padded to `hid` rows).
    b1 = b_ref[:hid, 0:1]                    # (HID, 1) — broadcasts along lanes
    b2 = b_ref[:hid, 1:2]                    # (HID, 1)
    b3 = b_ref[:act_dim, 2:3]                # (ACT, 1)

    # x @ W.T expressed feature-major: contract W's dim 1 against the tile's
    # feature axis (dim 1) -> (out_feat, TB).
    def wx(w, x):
        return lax.dot_general(w, x, (((1,), (1,)), ((), ())),
                               preferred_element_type=jnp.float32)

    # Layer 1: relu(W1 @ [state; action] + b1).  The torch concat is fused as a
    # split matmul against the pre-split halves of W1 — q never materializes.
    h1 = jnp.maximum(
        wx(w1s_ref[...], s_ref[...]) + wx(w1a_ref[...], a_ref[...]) + b1,
        0.0)                                                         # (HID, TB)

    # Layer 2: relu(W2 @ h1 + b2)
    h2 = jnp.maximum(
        jnp.dot(w2_ref[...], h1, preferred_element_type=jnp.float32) + b2,
        0.0)                                                         # (HID, TB)

    # Layer 3: W3 @ h2 + b3 (no activation), then the tiny (ACT, TB)->(TB, ACT)
    # transpose (cheap XLU op) so the store is batch-major.
    y = jnp.dot(w3_ref[...], h2, preferred_element_type=jnp.float32) + b3
    out_ref[...] = y.T.astype(out_ref.dtype)                         # (TB, ACT)


def _choose_batch_tile(B, *, single_step_max=4096, max_tile=8192, lane=128):
    """Single grid step for small/medium B (optimal on v5e/v6e, 1 TC).  For
    large B aim for ~2 lane-aligned 'parallel' steps so both v7x TCs get work.
    """
    if B <= single_step_max:
        return B
    half = (B + 1) // 2
    tb = ((half + lane - 1) // lane) * lane
    return min(tb, max_tile)


def critic1_forward(state, action, params, *, batch_tile=None):
    """3-layer SAC critic MLP.

    state: (B, obs_dim) f32, action: (B, act_in) f32.
    params: dict from pack_params: w1_s (H, OBS), w1_a (H, ACT_IN), w2 (H, H),
            w3 (ACT, H), bias (H, 3) packed.
    Returns (B, ACT) f32.
    batch_tile (optional): must equal B or be a multiple of 128.
    """
    B, obs_dim = state.shape
    act_in = action.shape[1]
    w1s, w1a = params["w1_s"], params["w1_a"]
    w2, w3, bias = params["w2"], params["w3"], params["bias"]
    act_dim = w3.shape[0]

    tb = batch_tile if batch_tile is not None else _choose_batch_tile(B)
    tb = min(tb, B)
    grid = (pl.cdiv(B, tb),)

    def batch_spec(feat):
        return pl.BlockSpec((tb, feat), lambda i: (i, 0))

    def const_spec(arr):
        # Full array, same block every step -> stays resident in VMEM.
        # (pipeline_mode=pl.Buffered(1) would halve the resident footprint on
        #  v7x if HID is scaled up; irrelevant at these sizes.)
        return pl.BlockSpec(arr.shape, lambda i: (0, 0))

    out = pl.pallas_call(
        critic1_kernel,
        out_shape=jax.ShapeDtypeStruct((B, act_dim), jnp.float32),
        grid=grid,
        in_specs=[
            batch_spec(obs_dim),     # state tile   (TB, OBS)
            batch_spec(act_in),      # action tile  (TB, ACT_IN)
            const_spec(w1s),         # (HID, OBS)
            const_spec(w1a),         # (HID, ACT_IN)
            const_spec(w2),          # (HID, HID)
            const_spec(w3),          # (ACT, HID)
            const_spec(bias),        # (HID, 3) packed biases
        ],
        out_specs=batch_spec(act_dim),   # (TB, ACT) batch-major output
        compiler_params=pltpu.CompilerParams(
            dimension_semantics=("parallel",)),   # batch tiles shard across TCs
    )(state.astype(jnp.float32), action.astype(jnp.float32),
      w1s, w1a, w2, w3, bias)

    return out


def init_params(key, obs_dim, act_dim, hidden_dim):
    """torch.nn.Linear-style init, torch weight layout (out_features, in_features)."""
    ks = jax.random.split(key, 6)

    def lin(kw, kb, fan_in, fan_out):
        bound = 1.0 / np.sqrt(fan_in)
        w = jax.random.uniform(kw, (fan_out, fan_in), jnp.float32, -bound, bound)
        b = jax.random.uniform(kb, (fan_out,), jnp.float32, -bound, bound)
        return w, b

    w1, b1 = lin(ks[0], ks[1], obs_dim + act_dim, hidden_dim)
    w2, b2 = lin(ks[2], ks[3], hidden_dim, hidden_dim)
    w3, b3 = lin(ks[4], ks[5], hidden_dim, act_dim)
    return (w1, b1), (w2, b2), (w3, b3)


def pack_params(w1, b1, w2, b2, w3, b3, *, obs_dim):
    """Pre-split W1 at the state/action boundary and pack the three bias
    vectors into one (rows, 3) array (one resident DMA instead of three)."""
    w1_s = w1[:, :obs_dim]                 # (HID, OBS)
    w1_a = w1[:, obs_dim:]                 # (HID, ACT_IN)
    rows = max(b1.shape[0], b2.shape[0], b3.shape[0])

    def pad(b):
        return jnp.pad(b, (0, rows - b.shape[0]))

    bias = jnp.stack([pad(b1), pad(b2), pad(b3)], axis=1)   # (rows, 3)
    return {"w1_s": w1_s, "w1_a": w1_a, "w2": w2, "w3": w3, "bias": bias}


if __name__ == "__main__":
    # Small, module-consistent shapes: obs_dim=16, act_dim=8, hidden=32, batch=512.
    OBS, ACT, HID, B = 16, 8, 32, 512

    key = jax.random.PRNGKey(0)
    k_state, k_action, k_params = jax.random.split(key, 3)

    state = jax.random.normal(k_state, (B, OBS), jnp.float32)
    action = jax.random.normal(k_action, (B, ACT), jnp.float32)

    (w1, b1), (w2, b2), (w3, b3) = init_params(k_params, OBS, ACT, HID)
    params = pack_params(w1, b1, w2, b2, w3, b3, obs_dim=OBS)

    # B=512 <= 4096 -> the whole batch runs as a single grid step.
    out = critic1_forward(state, action, params)
    out = jax.block_until_ready(out)

    # Pure-JAX reference of the same forward pass (torch-layout weights).
    q = jnp.concatenate([state, action], axis=1)
    h = jnp.maximum(q @ w1.T + b1, 0.0)
    h = jnp.maximum(h @ w2.T + b2, 0.0)
    ref = h @ w3.T + b3
    np.testing.assert_allclose(np.asarray(out), np.asarray(ref),
                               rtol=1e-4, atol=1e-4)

    print("KERNEL_OK")
</pallas_src>

<mosaic_0001>
module attributes {stable_mosaic.version = 11 : i64} {
  func.func @critic1_kernel(%arg0: i32, %arg1: memref<512x16xf32, #tpu.memory_space<vmem>>, %arg2: memref<512x8xf32, #tpu.memory_space<vmem>>, %arg3: memref<32x16xf32, #tpu.memory_space<vmem>>, %arg4: memref<32x8xf32, #tpu.memory_space<vmem>>, %arg5: memref<32x32xf32, #tpu.memory_space<vmem>>, %arg6: memref<8x32xf32, #tpu.memory_space<vmem>>, %arg7: memref<32x3xf32, #tpu.memory_space<vmem>>, %arg8: memref<512x8xf32, #tpu.memory_space<vmem>>) attributes {dimension_semantics = [#tpu.dimension_semantics<parallel>], iteration_bounds = array<i64: 1>, scalar_prefetch = 0 : i64, scratch_operands = 0 : i64, tpu.core_type = #tpu.core_type<tc>, window_params = [{transform_indices = @transform_0, window_bounds = array<i64: 512, 16>}, {transform_indices = @transform_1, window_bounds = array<i64: 512, 8>}, {pipeline_mode = #tpu.pipeline_mode<synchronous>, transform_indices = @transform_2, window_bounds = array<i64: 32, 16>}, {pipeline_mode = #tpu.pipeline_mode<synchronous>, transform_indices = @transform_3, window_bounds = array<i64: 32, 8>}, {pipeline_mode = #tpu.pipeline_mode<synchronous>, transform_indices = @transform_4, window_bounds = array<i64: 32, 32>}, {pipeline_mode = #tpu.pipeline_mode<synchronous>, transform_indices = @transform_5, window_bounds = array<i64: 8, 32>}, {pipeline_mode = #tpu.pipeline_mode<synchronous>, transform_indices = @transform_6, window_bounds = array<i64: 32, 3>}, {transform_indices = @transform_7, window_bounds = array<i64: 512, 8>}]} {
    %c0 = arith.constant 0 : index
    %c0_0 = arith.constant 0 : index
    %0 = vector.load %arg7[%c0, %c0_0] : memref<32x3xf32, #tpu.memory_space<vmem>>, vector<32x1xf32>
    %c0_1 = arith.constant 0 : index
    %c1 = arith.constant 1 : index
    %1 = vector.load %arg7[%c0_1, %c1] : memref<32x3xf32, #tpu.memory_space<vmem>>, vector<32x1xf32>
    %c0_2 = arith.constant 0 : index
    %c2 = arith.constant 2 : index
    %2 = vector.load %arg7[%c0_2, %c2] : memref<32x3xf32, #tpu.memory_space<vmem>>, vector<8x1xf32>
    %c0_3 = arith.constant 0 : index
    %c0_4 = arith.constant 0 : index
    %3 = vector.load %arg3[%c0_3, %c0_4] : memref<32x16xf32, #tpu.memory_space<vmem>>, vector<32x16xf32>
    %c0_5 = arith.constant 0 : index
    %c0_6 = arith.constant 0 : index
    %4 = vector.load %arg1[%c0_5, %c0_6] : memref<512x16xf32, #tpu.memory_space<vmem>>, vector<512x16xf32>
    %cst = arith.constant dense<0.000000e+00> : vector<32x512xf32>
    %5 = tpu.matmul %3, %4, %cst {dimension_numbers = #tpu.dot_dimension_numbers<[1], [1], [0], [0], [0, 0, 1, 0], [], []>} : vector<32x16xf32>, vector<512x16xf32>, vector<32x512xf32> -> vector<32x512xf32>
    %c0_7 = arith.constant 0 : index
    %c0_8 = arith.constant 0 : index
    %6 = vector.load %arg4[%c0_7, %c0_8] : memref<32x8xf32, #tpu.memory_space<vmem>>, vector<32x8xf32>
    %c0_9 = arith.constant 0 : index
    %c0_10 = arith.constant 0 : index
    %7 = vector.load %arg2[%c0_9, %c0_10] : memref<512x8xf32, #tpu.memory_space<vmem>>, vector<512x8xf32>
    %cst_11 = arith.constant dense<0.000000e+00> : vector<32x512xf32>
    %8 = tpu.matmul %6, %7, %cst_11 {dimension_numbers = #tpu.dot_dimension_numbers<[1], [1], [0], [0], [0, 0, 1, 0], [], []>} : vector<32x8xf32>, vector<512x8xf32>, vector<32x512xf32> -> vector<32x512xf32>
    %9 = arith.addf %5, %8 : vector<32x512xf32>
    %10 = vector.broadcast %0 : vector<32x1xf32> to vector<32x512xf32>
    %11 = arith.addf %9, %10 : vector<32x512xf32>
    %cst_12 = arith.constant 0.000000e+00 : f32
    %12 = vector.broadcast %cst_12 : f32 to vector<32x512xf32>
    %13 = arith.maximumf %11, %12 : vector<32x512xf32>
    %c0_13 = arith.constant 0 : index
    %c0_14 = arith.constant 0 : index
    %14 = vector.load %arg5[%c0_13, %c0_14] : memref<32x32xf32, #tpu.memory_space<vmem>>, vector<32x32xf32>
    %cst_15 = arith.constant dense<0.000000e+00> : vector<32x512xf32>
    %15 = tpu.matmul %14, %13, %cst_15 {dimension_numbers = #tpu.dot_dimension_numbers<[1], [0], [0], [1], [0, 0, 1, 1], [], []>} : vector<32x32xf32>, vector<32x512xf32>, vector<32x512xf32> -> vector<32x512xf32>
    %16 = vector.broadcast %1 : vector<32x1xf32> to vector<32x512xf32>
    %17 = arith.addf %15, %16 : vector<32x512xf32>
    %cst_16 = arith.constant 0.000000e+00 : f32
    %18 = vector.broadcast %cst_16 : f32 to vector<32x512xf32>
    %19 = arith.maximumf %17, %18 : vector<32x512xf32>
    %c0_17 = arith.constant 0 : index
    %c0_18 = arith.constant 0 : index
    %20 = vector.load %arg6[%c0_17, %c0_18] : memref<8x32xf32, #tpu.memory_space<vmem>>, vector<8x32xf32>
    %cst_19 = arith.constant dense<0.000000e+00> : vector<8x512xf32>
    %21 = tpu.matmul %20, %19, %cst_19 {dimension_numbers = #tpu.dot_dimension_numbers<[1], [0], [0], [1], [0, 0, 1, 1], [], []>} : vector<8x32xf32>, vector<32x512xf32>, vector<8x512xf32> -> vector<8x512xf32>
    %22 = vector.broadcast %2 : vector<8x1xf32> to vector<8x512xf32>
    %23 = arith.addf %21, %22 : vector<8x512xf32>
    %24 = tpu.transpose %23, [1, 0] : vector<8x512xf32> -> vector<512x8xf32>
    %c0_20 = arith.constant 0 : index
    %c0_21 = arith.constant 0 : index
    %25 = vector.load %arg8[%c0_20, %c0_21] : memref<512x8xf32, #tpu.memory_space<vmem>>, vector<512x8xf32>
    tpu.vector_store %arg8[%c0_20, %c0_21], %24 {strides = array<i32>} : memref<512x8xf32, #tpu.memory_space<vmem>>, vector<512x8xf32>,
    return
  }
  func.func @transform_0(%arg0: i32) -> (i32, i32) {
    %c0_i32 = arith.constant 0 : i32
    %c0_i32_0 = arith.constant 0 : i32
    return %arg0, %c0_i32 : i32, i32
  }
  func.func @transform_1(%arg0: i32) -> (i32, i32) {
    %c0_i32 = arith.constant 0 : i32
    %c0_i32_0 = arith.constant 0 : i32
    return %arg0, %c0_i32 : i32, i32
  }
  func.func @transform_2(%arg0: i32) -> (i32, i32) {
    %c0_i32 = arith.constant 0 : i32
    %c0_i32_0 = arith.constant 0 : i32
    %c0_i32_1 = arith.constant 0 : i32
    return %c0_i32, %c0_i32_0 : i32, i32
  }
  func.func @transform_3(%arg0: i32) -> (i32, i32) {
    %c0_i32 = arith.constant 0 : i32
    %c0_i32_0 = arith.constant 0 : i32
    %c0_i32_1 = arith.constant 0 : i32
    return %c0_i32, %c0_i32_0 : i32, i32
  }
  func.func @transform_4(%arg0: i32) -> (i32, i32) {
    %c0_i32 = arith.constant 0 : i32
    %c0_i32_0 = arith.constant 0 : i32
    %c0_i32_1 = arith.constant 0 : i32
    return %c0_i32, %c0_i32_0 : i32, i32
  }
  func.func @transform_5(%arg0: i32) -> (i32, i32) {
    %c0_i32 = arith.constant 0 : i32
    %c0_i32_0 = arith.constant 0 : i32
    %c0_i32_1 = arith.constant 0 : i32
    return %c0_i32, %c0_i32_0 : i32, i32
  }
  func.func @transform_6(%arg0: i32) -> (i32, i32) {
    %c0_i32 = arith.constant 0 : i32
    %c0_i32_0 = arith.constant 0 : i32
    %c0_i32_1 = arith.constant 0 : i32
    return %c0_i32, %c0_i32_0 : i32, i32
  }
  func.func @transform_7(%arg0: i32) -> (i32, i32) {
    %c0_i32 = arith.constant 0 : i32
    %c0_i32_0 = arith.constant 0 : i32
    return %arg0, %c0_i32 : i32, i32
  }
}

</mosaic_0001>

<llo_original>
// kernel: tpu_custom_call.1
$region0: #{tpu_custom_call.1}
  #allocation0 [shape = 'u32[]', space=smem, size = 0x4, offset = 0x4, fixed_abs, tag = 'smem constant byte address 0x4 - core index']
  #allocation1 [shape = 'u32[72,128]{1,0:T(1,128)}', space=vmem, size = 0x9000, scoped, tag = 'internal scratch']
  %s0 = inlined_call_operand.vmem [shape: f32[512,16], index: 0, kind: input, shape index: {}]
  %s1 = inlined_call_operand.vmem [shape: f32[512,8], index: 1, kind: input, shape index: {}]
  %s2 = inlined_call_operand.vmem [shape: f32[32,16], index: 2, kind: input, shape index: {}]
  %s3 = inlined_call_operand.vmem [shape: f32[32,8], index: 3, kind: input, shape index: {}]
  %s4 = inlined_call_operand.vmem [shape: f32[32,32], index: 4, kind: input, shape index: {}]
  %s5 = inlined_call_operand.vmem [shape: f32[8,32], index: 5, kind: input, shape index: {}]
  %s6 = inlined_call_operand.vmem [shape: f32[32,3], index: 6, kind: input, shape index: {}]
  %s7 = inlined_call_operand.vmem [shape: f32[512,8], index: 7, kind: output, shape index: {}]
  %s8 = sld [smem:[#allocation0]]
  $region38: #{tpu_custom_call.1} parent=0
    _
  %s10 = ssub.s32 1, %s8
  %s11 = scalar_select 0, %s10, %s8
  // Predicated region
  $region2: #{tpu_custom_call.1} parent=0 // pred_check
    _
  $region3: #{tpu_custom_call.1} parent=0 // pred_check_branch
    %13 = sbr.rel (0) target = $region5
  $region4: #{tpu_custom_call.1} parent=0 // pred_region
    _
  $region5: #{tpu_custom_call.1} parent=0 // pred_fallthru
    _
  // Predicated region
  $region6: #{tpu_custom_call.1} parent=0 // pred_check
    _
  $region7: #{tpu_custom_call.1} parent=0 // pred_check_branch
    %15 = sbr.rel (0) target = $region9
  $region8: #{tpu_custom_call.1} parent=0 // pred_region
    _
  $region9: #{tpu_custom_call.1} parent=0 // pred_fallthru
    _
  // Predicated region
  $region10: #{tpu_custom_call.1} parent=0 // pred_check
    _
  $region11: #{tpu_custom_call.1} parent=0 // pred_check_branch
    %17 = sbr.rel (0) target = $region13
  $region12: #{tpu_custom_call.1} parent=0 // pred_region
    _
  $region13: #{tpu_custom_call.1} parent=0 // pred_fallthru
    _
  // Predicated region
  $region14: #{tpu_custom_call.1} parent=0 // pred_check
    _
  $region15: #{tpu_custom_call.1} parent=0 // pred_check_branch
    %19 = sbr.rel (0) target = $region17
  $region16: #{tpu_custom_call.1} parent=0 // pred_region
    _
  $region17: #{tpu_custom_call.1} parent=0 // pred_fallthru
    _
  // Predicated region
  $region18: #{tpu_custom_call.1} parent=0 // pred_check
    _
  $region19: #{tpu_custom_call.1} parent=0 // pred_check_branch
    %21 = sbr.rel (0) target = $region21
  $region20: #{tpu_custom_call.1} parent=0 // pred_region
    _
  $region21: #{tpu_custom_call.1} parent=0 // pred_fallthru
    _
  // Predicated region
  $region22: #{tpu_custom_call.1} parent=0 // pred_check
    _
  $region23: #{tpu_custom_call.1} parent=0 // pred_check_branch
    %23 = sbr.rel (0) target = $region25
  $region24: #{tpu_custom_call.1} parent=0 // pred_region
    _
  $region25: #{tpu_custom_call.1} parent=0 // pred_fallthru
    _
  // Predicated region
  $region26: #{tpu_custom_call.1} parent=0 // pred_check
    _
  $region27: #{tpu_custom_call.1} parent=0 // pred_check_branch
    %25 = sbr.rel (0) target = $region29
  $region28: #{tpu_custom_call.1} parent=0 // pred_region
    _
  $region29: #{tpu_custom_call.1} parent=0 // pred_fallthru
    _
  %v26 = vld [vmem:[%s6] sm:$0xff]
  %v27 = vld [vmem:[%s6 + $0x8] sm:$0xff]
  %v28 = vld [vmem:[%s6 + $0x10] sm:$0xff]
  %v29 = vld [vmem:[%s6 + $0x18] sm:$0xff]
  %v30 = vld [vmem:[%s2] sm:$0xff]
  %v31 = vld [vmem:[%s2 + $0x8] sm:$0xff]
  %v32 = vld [vmem:[%s2 + $0x10] sm:$0xff]
  %v33 = vld [vmem:[%s2 + $0x18] sm:$0xff]
  %v34 = vld [vmem:[%s0] sm:$0xff]
  %v35 = vld [vmem:[%s0 + $0x8] sm:$0xff]
  %v36 = vld [vmem:[%s0 + $0x10] sm:$0xff]
  %v37 = vld [vmem:[%s0 + $0x18] sm:$0xff]
  %v38 = vld [vmem:[%s0 + $0x20] sm:$0xff]
  %v39 = vld [vmem:[%s0 + $0x28] sm:$0xff]
  %v40 = vld [vmem:[%s0 + $0x30] sm:$0xff]
  %v41 = vld [vmem:[%s0 + $0x38] sm:$0xff]
  %v42 = vld [vmem:[%s0 + $0x40] sm:$0xff]
  %v43 = vld [vmem:[%s0 + $0x48] sm:$0xff]
  %v44 = vld [vmem:[%s0 + $0x50] sm:$0xff]
  %v45 = vld [vmem:[%s0 + $0x58] sm:$0xff]
  %v46 = vld [vmem:[%s0 + $0x60] sm:$0xff]
  %v47 = vld [vmem:[%s0 + $0x68] sm:$0xff]
  %v48 = vld [vmem:[%s0 + $0x70] sm:$0xff]
  %v49 = vld [vmem:[%s0 + $0x78] sm:$0xff]
  %v50 = vld [vmem:[%s0 + $0x80] sm:$0xff]
  %v51 = vld [vmem:[%s0 + $0x88] sm:$0xff]
  %v52 = vld [vmem:[%s0 + $0x90] sm:$0xff]
  %v53 = vld [vmem:[%s0 + $0x98] sm:$0xff]
  %v54 = vld [vmem:[%s0 + $0xa0] sm:$0xff]
  %v55 = vld [vmem:[%s0 + $0xa8] sm:$0xff]
  %v56 = vld [vmem:[%s0 + $0xb0] sm:$0xff]
  %v57 = vld [vmem:[%s0 + $0xb8] sm:$0xff]
  %v58 = vld [vmem:[%s0 + $0xc0] sm:$0xff]
  %v59 = vld [vmem:[%s0 + $0xc8] sm:$0xff]
  %v60 = vld [vmem:[%s0 + $0xd0] sm:$0xff]
  %v61 = vld [vmem:[%s0 + $0xd8] sm:$0xff]
  %v62 = vld [vmem:[%s0 + $0xe0] sm:$0xff]
  %v63 = vld [vmem:[%s0 + $0xe8] sm:$0xff]
  %v64 = vld [vmem:[%s0 + $0xf0] sm:$0xff]
  %v65 = vld [vmem:[%s0 + $0xf8] sm:$0xff]
  %v66 = vld [vmem:[%s0 + $0x100] sm:$0xff]
  %v67 = vld [vmem:[%s0 + $0x108] sm:$0xff]
  %v68 = vld [vmem:[%s0 + $0x110] sm:$0xff]
  %v69 = vld [vmem:[%s0 + $0x118] sm:$0xff]
  %v70 = vld [vmem:[%s0 + $0x120] sm:$0xff]
  %v71 = vld [vmem:[%s0 + $0x128] sm:$0xff]
  %v72 = vld [vmem:[%s0 + $0x130] sm:$0xff]
  %v73 = vld [vmem:[%s0 + $0x138] sm:$0xff]
  %v74 = vld [vmem:[%s0 + $0x140] sm:$0xff]
  %v75 = vld [vmem:[%s0 + $0x148] sm:$0xff]
  %v76 = vld [vmem:[%s0 + $0x150] sm:$0xff]
  %v77 = vld [vmem:[%s0 + $0x158] sm:$0xff]
  %v78 = vld [vmem:[%s0 + $0x160] sm:$0xff]
  %v79 = vld [vmem:[%s0 + $0x168] sm:$0xff]
  %v80 = vld [vmem:[%s0 + $0x170] sm:$0xff]
  %v81 = vld [vmem:[%s0 + $0x178] sm:$0xff]
  %v82 = vld [vmem:[%s0 + $0x180] sm:$0xff]
  %v83 = vld [vmem:[%s0 + $0x188] sm:$0xff]
  %v84 = vld [vmem:[%s0 + $0x190] sm:$0xff]
  %v85 = vld [vmem:[%s0 + $0x198] sm:$0xff]
  %v86 = vld [vmem:[%s0 + $0x1a0] sm:$0xff]
  %v87 = vld [vmem:[%s0 + $0x1a8] sm:$0xff]
  %v88 = vld [vmem:[%s0 + $0x1b0] sm:$0xff]
  %v89 = vld [vmem:[%s0 + $0x1b8] sm:$0xff]
  %v90 = vld [vmem:[%s0 + $0x1c0] sm:$0xff]
  %v91 = vld [vmem:[%s0 + $0x1c8] sm:$0xff]
  %v92 = vld [vmem:[%s0 + $0x1d0] sm:$0xff]
  %v93 = vld [vmem:[%s0 + $0x1d8] sm:$0xff]
  %v94 = vld [vmem:[%s0 + $0x1e0] sm:$0xff]
  %v95 = vld [vmem:[%s0 + $0x1e8] sm:$0xff]
  %v96 = vld [vmem:[%s0 + $0x1f0] sm:$0xff]
  %v97 = vld [vmem:[%s0 + $0x1f8] sm:$0xff]
  %v98 = vld [vmem:[%s3] sm:$0xff]
  %v99 = vld [vmem:[%s3 + $0x8] sm:$0xff]
  %v100 = vld [vmem:[%s3 + $0x10] sm:$0xff]
  %v101 = vld [vmem:[%s3 + $0x18] sm:$0xff]
  %v102 = vld [vmem:[%s1] sm:$0xff]
  %v103 = vld [vmem:[%s1 + $0x8] sm:$0xff]
  %v104 = vld [vmem:[%s1 + $0x10] sm:$0xff]
  %v105 = vld [vmem:[%s1 + $0x18] sm:$0xff]
  %v106 = vld [vmem:[%s1 + $0x20] sm:$0xff]
  %v107 = vld [vmem:[%s1 + $0x28] sm:$0xff]
  %v108 = vld [vmem:[%s1 + $0x30] sm:$0xff]
  %v109 = vld [vmem:[%s1 + $0x38] sm:$0xff]
  %v110 = vld [vmem:[%s1 + $0x40] sm:$0xff]
  %v111 = vld [vmem:[%s1 + $0x48] sm:$0xff]
  %v112 = vld [vmem:[%s1 + $0x50] sm:$0xff]
  %v113 = vld [vmem:[%s1 + $0x58] sm:$0xff]
  %v114 = vld [vmem:[%s1 + $0x60] sm:$0xff]
  %v115 = vld [vmem:[%s1 + $0x68] sm:$0xff]
  %v116 = vld [vmem:[%s1 + $0x70] sm:$0xff]
  %v117 = vld [vmem:[%s1 + $0x78] sm:$0xff]
  %v118 = vld [vmem:[%s1 + $0x80] sm:$0xff]
  %v119 = vld [vmem:[%s1 + $0x88] sm:$0xff]
  %v120 = vld [vmem:[%s1 + $0x90] sm:$0xff]
  %v121 = vld [vmem:[%s1 + $0x98] sm:$0xff]
  %v122 = vld [vmem:[%s1 + $0xa0] sm:$0xff]
  %v123 = vld [vmem:[%s1 + $0xa8] sm:$0xff]
  %v124 = vld [vmem:[%s1 + $0xb0] sm:$0xff]
  %v125 = vld [vmem:[%s1 + $0xb8] sm:$0xff]
  %v126 = vld [vmem:[%s1 + $0xc0] sm:$0xff]
  %v127 = vld [vmem:[%s1 + $0xc8] sm:$0xff]
  %v128 = vld [vmem:[%s1 + $0xd0] sm:$0xff]
  %v129 = vld [vmem:[%s1 + $0xd8] sm:$0xff]
  %v130 = vld [vmem:[%s1 + $0xe0] sm:$0xff]
  %v131 = vld [vmem:[%s1 + $0xe8] sm:$0xff]
  %v132 = vld [vmem:[%s1 + $0xf0] sm:$0xff]
  %v133 = vld [vmem:[%s1 + $0xf8] sm:$0xff]
  %v134 = vld [vmem:[%s1 + $0x100] sm:$0xff]
  %v135 = vld [vmem:[%s1 + $0x108] sm:$0xff]
  %v136 = vld [vmem:[%s1 + $0x110] sm:$0xff]
  %v137 = vld [vmem:[%s1 + $0x118] sm:$0xff]
  %v138 = vld [vmem:[%s1 + $0x120] sm:$0xff]
  %v139 = vld [vmem:[%s1 + $0x128] sm:$0xff]
  %v140 = vld [vmem:[%s1 + $0x130] sm:$0xff]
  %v141 = vld [vmem:[%s1 + $0x138] sm:$0xff]
  %v142 = vld [vmem:[%s1 + $0x140] sm:$0xff]
  %v143 = vld [vmem:[%s1 + $0x148] sm:$0xff]
  %v144 = vld [vmem:[%s1 + $0x150] sm:$0xff]
  %v145 = vld [vmem:[%s1 + $0x158] sm:$0xff]
  %v146 = vld [vmem:[%s1 + $0x160] sm:$0xff]
  %v147 = vld [vmem:[%s1 + $0x168] sm:$0xff]
  %v148 = vld [vmem:[%s1 + $0x170] sm:$0xff]
  %v149 = vld [vmem:[%s1 + $0x178] sm:$0xff]
  %v150 = vld [vmem:[%s1 + $0x180] sm:$0xff]
  %v151 = vld [vmem:[%s1 + $0x188] sm:$0xff]
  %v152 = vld [vmem:[%s1 + $0x190] sm:$0xff]
  %v153 = vld [vmem:[%s1 + $0x198] sm:$0xff]
  %v154 = vld [vmem:[%s1 + $0x1a0] sm:$0xff]
  %v155 = vld [vmem:[%s1 + $0x1a8] sm:$0xff]
  %v156 = vld [vmem:[%s1 + $0x1b0] sm:$0xff]
  %v157 = vld [vmem:[%s1 + $0x1b8] sm:$0xff]
  %v158 = vld [vmem:[%s1 + $0x1c0] sm:$0xff]
  %v159 = vld [vmem:[%s1 + $0x1c8] sm:$0xff]
  %v160 = vld [vmem:[%s1 + $0x1d0] sm:$0xff]
  %v161 = vld [vmem:[%s1 + $0x1d8] sm:$0xff]
  %v162 = vld [vmem:[%s1 + $0x1e0] sm:$0xff]
  %v163 = vld [vmem:[%s1 + $0x1e8] sm:$0xff]
  %v164 = vld [vmem:[%s1 + $0x1f0] sm:$0xff]
  %v165 = vld [vmem:[%s1 + $0x1f8] sm:$0xff]
  %vm166 = vcmask 64512
  %v168 = vsel %vm166, %v98, 0
  %v171 = vsel %vm166, %v99, 0
  %v174 = vsel %vm166, %v100, 0
  %v177 = vsel %vm166, %v101, 0
  %v180 = vsel %vm166, %v102, 0
  %v183 = vsel %vm166, %v103, 0
  %v186 = vsel %vm166, %v104, 0
  %v189 = vsel %vm166, %v105, 0
  %v192 = vsel %vm166, %v106, 0
  %v195 = vsel %vm166, %v107, 0
  %v198 = vsel %vm166, %v108, 0
  %v201 = vsel %vm166, %v109, 0
  %v204 = vsel %vm166, %v110, 0
  %v207 = vsel %vm166, %v111, 0
  %v210 = vsel %vm166, %v112, 0
  %v213 = vsel %vm166, %v113, 0
  %v216 = vsel %vm166, %v114, 0
  %v219 = vsel %vm166, %v115, 0
  %v222 = vsel %vm166, %v116, 0
  %v225 = vsel %vm166, %v117, 0
  %v228 = vsel %vm166, %v118, 0
  %v231 = vsel %vm166, %v119, 0
  %v234 = vsel %vm166, %v120, 0
  %v237 = vsel %vm166, %v121, 0
  %v240 = vsel %vm166, %v122, 0
  %v243 = vsel %vm166, %v123, 0
  %v246 = vsel %vm166, %v124, 0
  %v249 = vsel %vm166, %v125, 0
  %v252 = vsel %vm166, %v126, 0
  %v255 = vsel %vm166, %v127, 0
  %v258 = vsel %vm166, %v128, 0
  %v261 = vsel %vm166, %v129, 0
  %v264 = vsel %vm166, %v130, 0
  %v267 = vsel %vm166, %v131, 0
  %v270 = vsel %vm166, %v132, 0
  %v273 = vsel %vm166, %v133, 0
  %v276 = vsel %vm166, %v134, 0
  %v279 = vsel %vm166, %v135, 0
  %v282 = vsel %vm166, %v136, 0
  %v285 = vsel %vm166, %v137, 0
  %v288 = vsel %vm166, %v138, 0
  %v291 = vsel %vm166, %v139, 0
  %v294 = vsel %vm166, %v140, 0
  %v297 = vsel %vm166, %v141, 0
  %v300 = vsel %vm166, %v142, 0
  %v303 = vsel %vm166, %v143, 0
  %v306 = vsel %vm166, %v144, 0
  %v309 = vsel %vm166, %v145, 0
  %v312 = vsel %vm166, %v146, 0
  %v315 = vsel %vm166, %v147, 0
  %v318 = vsel %vm166, %v148, 0
  %v321 = vsel %vm166, %v149, 0
  %v324 = vsel %vm166, %v150, 0
  %v327 = vsel %vm166, %v151, 0
  %v330 = vsel %vm166, %v152, 0
  %v333 = vsel %vm166, %v153, 0
  %v336 = vsel %vm166, %v154, 0
  %v339 = vsel %vm166, %v155, 0
  %v342 = vsel %vm166, %v156, 0
  %v345 = vsel %vm166, %v157, 0
  %v348 = vsel %vm166, %v158, 0
  %v351 = vsel %vm166, %v159, 0
  %v354 = vsel %vm166, %v160, 0
  %v357 = vsel %vm166, %v161, 0
  %v360 = vsel %vm166, %v162, 0
  %v363 = vsel %vm166, %v163, 0
  %v366 = vsel %vm166, %v164, 0
  %v369 = vsel %vm166, %v165, 0
  %371 = vmatpush.xpose.msra.mxu0 %v225
  %372 = vmatpush.xpose.msra.mxu0 %v222
  %373 = vmatpush.xpose.msra.mxu0 %v219
  %374 = vmatpush.xpose.msra.mxu0 %v216
  %375 = vmatpush.xpose.msra.mxu0 %v213
  %376 = vmatpush.xpose.msra.mxu0 %v210
  %377 = vmatpush.xpose.msra.mxu0 %v207
  %378 = vmatpush.xpose.msra.mxu0 %v204
  %379 = vmatpush.xpose.msra.mxu0 %v201
  %380 = vmatpush.xpose.msra.mxu0 %v198
  %381 = vmatpush.xpose.msra.mxu0 %v195
  %382 = vmatpush.xpose.msra.mxu0 %v192
  %383 = vmatpush.xpose.msra.mxu0 %v189
  %384 = vmatpush.xpose.msra.mxu0 %v186
  %385 = vmatpush.xpose.msra.mxu0 %v183
  %386 = vmatpush.xpose.msra.mxu0 %v180
  %387 = vmatmul.f32.gmra.mxu0 %v168
  %v388 = vpop.f32.mrf.mxu0
  %v389 = vadd.f32 0.0, %v388
  %390 = vmatmul.f32.gmra.mxu0 %v171
  %v391 = vpop.f32.mrf.mxu0
  %v392 = vadd.f32 0.0, %v391
  %393 = vmatmul.f32.gmra.mxu0 %v174
  %v394 = vpop.f32.mrf.mxu0
  %v395 = vadd.f32 0.0, %v394
  %396 = vmatmul.f32.gmra.mxu0 %v177
  %v397 = vpop.f32.mrf.mxu0
  %v398 = vadd.f32 0.0, %v397
  %399 = vdwg.mxu0
  %400 = vmatpush.xpose.msra.mxu0 %v273
  %401 = vmatpush.xpose.msra.mxu0 %v270
  %402 = vmatpush.xpose.msra.mxu0 %v267
  %403 = vmatpush.xpose.msra.mxu0 %v264
  %404 = vmatpush.xpose.msra.mxu0 %v261
  %405 = vmatpush.xpose.msra.mxu0 %v258
  %406 = vmatpush.xpose.msra.mxu0 %v255
  %407 = vmatpush.xpose.msra.mxu0 %v252
  %408 = vmatpush.xpose.msra.mxu0 %v249
  %409 = vmatpush.xpose.msra.mxu0 %v246
  %410 = vmatpush.xpose.msra.mxu0 %v243
  %411 = vmatpush.xpose.msra.mxu0 %v240
  %412 = vmatpush.xpose.msra.mxu0 %v237
  %413 = vmatpush.xpose.msra.mxu0 %v234
  %414 = vmatpush.xpose.msra.mxu0 %v231
  %415 = vmatpush.xpose.msra.mxu0 %v228
  %416 = vmatmul.f32.gmra.mxu0 %v168
  %v417 = vpop.f32.mrf.mxu0
  %v418 = vadd.f32 0.0, %v417
  %419 = vmatmul.f32.gmra.mxu0 %v171
  %v420 = vpop.f32.mrf.mxu0
  %v421 = vadd.f32 0.0, %v420
  %422 = vmatmul.f32.gmra.mxu0 %v174
  %v423 = vpop.f32.mrf.mxu0
  %v424 = vadd.f32 0.0, %v423
  %425 = vmatmul.f32.gmra.mxu0 %v177
  %v426 = vpop.f32.mrf.mxu0
  %v427 = vadd.f32 0.0, %v426
  %428 = vdwg.mxu0
  %429 = vmatpush.xpose.msra.mxu0 %v321
  %430 = vmatpush.xpose.msra.mxu0 %v318
  %431 = vmatpush.xpose.msra.mxu0 %v315
  %432 = vmatpush.xpose.msra.mxu0 %v312
  %433 = vmatpush.xpose.msra.mxu0 %v309
  %434 = vmatpush.xpose.msra.mxu0 %v306
  %435 = vmatpush.xpose.msra.mxu0 %v303
  %436 = vmatpush.xpose.msra.mxu0 %v300
  %437 = vmatpush.xpose.msra.mxu0 %v297
  %438 = vmatpush.xpose.msra.mxu0 %v294
  %439 = vmatpush.xpose.msra.mxu0 %v291
  %440 = vmatpush.xpose.msra.mxu0 %v288
  %441 = vmatpush.xpose.msra.mxu0 %v285
  %442 = vmatpush.xpose.msra.mxu0 %v282
  %443 = vmatpush.xpose.msra.mxu0 %v279
  %444 = vmatpush.xpose.msra.mxu0 %v276
  %445 = vmatmul.f32.gmra.mxu0 %v168
  %v446 = vpop.f32.mrf.mxu0
  %v447 = vadd.f32 0.0, %v446
  %448 = vmatmul.f32.gmra.mxu0 %v171
  %v449 = vpop.f32.mrf.mxu0
  %v450 = vadd.f32 0.0, %v449
  %451 = vmatmul.f32.gmra.mxu0 %v174
  %v452 = vpop.f32.mrf.mxu0
  %v453 = vadd.f32 0.0, %v452
  %454 = vmatmul.f32.gmra.mxu0 %v177
  %v455 = vpop.f32.mrf.mxu0
  %v456 = vadd.f32 0.0, %v455
  %457 = vdwg.mxu0
  %458 = vmatpush.xpose.msra.mxu0 %v369
  %459 = vmatpush.xpose.msra.mxu0 %v366
  %460 = vmatpush.xpose.msra.mxu0 %v363
  %461 = vmatpush.xpose.msra.mxu0 %v360
  %462 = vmatpush.xpose.msra.mxu0 %v357
  %463 = vmatpush.xpose.msra.mxu0 %v354
  %464 = vmatpush.xpose.msra.mxu0 %v351
  %465 = vmatpush.xpose.msra.mxu0 %v348
  %466 = vmatpush.xpose.msra.mxu0 %v345
  %467 = vmatpush.xpose.msra.mxu0 %v342
  %468 = vmatpush.xpose.msra.mxu0 %v339
  %469 = vmatpush.xpose.msra.mxu0 %v336
  %470 = vmatpush.xpose.msra.mxu0 %v333
  %471 = vmatpush.xpose.msra.mxu0 %v330
  %472 = vmatpush.xpose.msra.mxu0 %v327
  %473 = vmatpush.xpose.msra.mxu0 %v324
  %474 = vmatmul.f32.gmra.mxu0 %v168
  %v475 = vpop.f32.mrf.mxu0
  %v476 = vadd.f32 0.0, %v475
  %477 = vmatmul.f32.gmra.mxu0 %v171
  %v478 = vpop.f32.mrf.mxu0
  %v479 = vadd.f32 0.0, %v478
  %480 = vmatmul.f32.gmra.mxu0 %v174
  %v481 = vpop.f32.mrf.mxu0
  %v482 = vadd.f32 0.0, %v481
  %483 = vmatmul.f32.gmra.mxu0 %v177
  %v484 = vpop.f32.mrf.mxu0
  %v485 = vadd.f32 0.0, %v484
  %486 = vdwg.mxu0
  %vm487 = vcmask 130048
  %v489 = vsel %vm487, %v30, 0
  %v492 = vsel %vm487, %v31, 0
  %v495 = vsel %vm487, %v32, 0
  %v498 = vsel %vm487, %v33, 0
  %v501 = vsel %vm487, %v34, 0
  %v504 = vsel %vm487, %v35, 0
  %v507 = vsel %vm487, %v36, 0
  %v510 = vsel %vm487, %v37, 0
  %v513 = vsel %vm487, %v38, 0
  %v516 = vsel %vm487, %v39, 0
  %v519 = vsel %vm487, %v40, 0
  %v522 = vsel %vm487, %v41, 0
  %v525 = vsel %vm487, %v42, 0
  %v528 = vsel %vm487, %v43, 0
  %v531 = vsel %vm487, %v44, 0
  %v534 = vsel %vm487, %v45, 0
  %v537 = vsel %vm487, %v46, 0
  %v540 = vsel %vm487, %v47, 0
  %v543 = vsel %vm487, %v48, 0
  %v546 = vsel %vm487, %v49, 0
  %v549 = vsel %vm487, %v50, 0
  %v552 = vsel %vm487, %v51, 0
  %v555 = vsel %vm487, %v52, 0
  %v558 = vsel %vm487, %v53, 0
  %v561 = vsel %vm487, %v54, 0
  %v564 = vsel %vm487, %v55, 0
  %v567 = vsel %vm487, %v56, 0
  %v570 = vsel %vm487, %v57, 0
  %v573 = vsel %vm487, %v58, 0
  %v576 = vsel %vm487, %v59, 0
  %v579 = vsel %vm487, %v60, 0
  %v582 = vsel %vm487, %v61, 0
  %v585 = vsel %vm487, %v62, 0
  %v588 = vsel %vm487, %v63, 0
  %v591 = vsel %vm487, %v64, 0
  %v594 = vsel %vm487, %v65, 0
  %v597 = vsel %vm487, %v66, 0
  %v600 = vsel %vm487, %v67, 0
  %v603 = vsel %vm487, %v68, 0
  %v606 = vsel %vm487, %v69, 0
  %v609 = vsel %vm487, %v70, 0
  %v612 = vsel %vm487, %v71, 0
  %v615 = vsel %vm487, %v72, 0
  %v618 = vsel %vm487, %v73, 0
  %v621 = vsel %vm487, %v74, 0
  %v624 = vsel %vm487, %v75, 0
  %v627 = vsel %vm487, %v76, 0
  %v630 = vsel %vm487, %v77, 0
  %v633 = vsel %vm487, %v78, 0
  %v636 = vsel %vm487, %v79, 0
  %v639 = vsel %vm487, %v80, 0
  %v642 = vsel %vm487, %v81, 0
  %v645 = vsel %vm487, %v82, 0
  %v648 = vsel %vm487, %v83, 0
  %v651 = vsel %vm487, %v84, 0
  %v654 = vsel %vm487, %v85, 0
  %v657 = vsel %vm487, %v86, 0
  %v660 = vsel %vm487, %v87, 0
  %v663 = vsel %vm487, %v88, 0
  %v666 = vsel %vm487, %v89, 0
  %v669 = vsel %vm487, %v90, 0
  %v672 = vsel %vm487, %v91, 0
  %v675 = vsel %vm487, %v92, 0
  %v678 = vsel %vm487, %v93, 0
  %v681 = vsel %vm487, %v94, 0
  %v684 = vsel %vm487, %v95, 0
  %v687 = vsel %vm487, %v96, 0
  %v690 = vsel %vm487, %v97, 0
  %692 = vmatpush.xpose.msra.mxu0 %v546
  %693 = vmatpush.xpose.msra.mxu0 %v543
  %694 = vmatpush.xpose.msra.mxu0 %v540
  %695 = vmatpush.xpose.msra.mxu0 %v537
  %696 = vmatpush.xpose.msra.mxu0 %v534
  %697 = vmatpush.xpose.msra.mxu0 %v531
  %698 = vmatpush.xpose.msra.mxu0 %v528
  %699 = vmatpush.xpose.msra.mxu0 %v525
  %700 = vmatpush.xpose.msra.mxu0 %v522
  %701 = vmatpush.xpose.msra.mxu0 %v519
  %702 = vmatpush.xpose.msra.mxu0 %v516
  %703 = vmatpush.xpose.msra.mxu0 %v513
  %704 = vmatpush.xpose.msra.mxu0 %v510
  %705 = vmatpush.xpose.msra.mxu0 %v507
  %706 = vmatpush.xpose.msra.mxu0 %v504
  %707 = vmatpush.xpose.msra.mxu0 %v501
  %708 = vmatmul.f32.gmra.mxu0 %v489
  %v709 = vpop.f32.mrf.mxu0
  %v710 = vadd.f32 %v389, %v709
  %711 = vmatmul.f32.gmra.mxu0 %v492
  %v712 = vpop.f32.mrf.mxu0
  %v713 = vadd.f32 %v392, %v712
  %714 = vmatmul.f32.gmra.mxu0 %v495
  %v715 = vpop.f32.mrf.mxu0
  %v716 = vadd.f32 %v395, %v715
  %717 = vmatmul.f32.gmra.mxu0 %v498
  %v718 = vpop.f32.mrf.mxu0
  %v719 = vadd.f32 %v398, %v718
  %720 = vdwg.mxu0
  %721 = vmatpush.xpose.msra.mxu0 %v594
  %722 = vmatpush.xpose.msra.mxu0 %v591
  %723 = vmatpush.xpose.msra.mxu0 %v588
  %724 = vmatpush.xpose.msra.mxu0 %v585
  %725 = vmatpush.xpose.msra.mxu0 %v582
  %726 = vmatpush.xpose.msra.mxu0 %v579
  %727 = vmatpush.xpose.msra.mxu0 %v576
  %728 = vmatpush.xpose.msra.mxu0 %v573
  %729 = vmatpush.xpose.msra.mxu0 %v570
  %730 = vmatpush.xpose.msra.mxu0 %v567
  %731 = vmatpush.xpose.msra.mxu0 %v564
  %732 = vmatpush.xpose.msra.mxu0 %v561
  %733 = vmatpush.xpose.msra.mxu0 %v558
  %734 = vmatpush.xpose.msra.mxu0 %v555
  %735 = vmatpush.xpose.msra.mxu0 %v552
  %736 = vmatpush.xpose.msra.mxu0 %v549
  %737 = vmatmul.f32.gmra.mxu0 %v489
  %v738 = vpop.f32.mrf.mxu0
  %v739 = vadd.f32 %v418, %v738
  %740 = vmatmul.f32.gmra.mxu0 %v492
  %v741 = vpop.f32.mrf.mxu0
  %v742 = vadd.f32 %v421, %v741
  %743 = vmatmul.f32.gmra.mxu0 %v495
  %v744 = vpop.f32.mrf.mxu0
  %v745 = vadd.f32 %v424, %v744
  %746 = vmatmul.f32.gmra.mxu0 %v498
  %v747 = vpop.f32.mrf.mxu0
  %v748 = vadd.f32 %v427, %v747
  %749 = vdwg.mxu0
  %750 = vmatpush.xpose.msra.mxu0 %v642
  %751 = vmatpush.xpose.msra.mxu0 %v639
  %752 = vmatpush.xpose.msra.mxu0 %v636
  %753 = vmatpush.xpose.msra.mxu0 %v633
  %754 = vmatpush.xpose.msra.mxu0 %v630
  %755 = vmatpush.xpose.msra.mxu0 %v627
  %756 = vmatpush.xpose.msra.mxu0 %v624
  %757 = vmatpush.xpose.msra.mxu0 %v621
  %758 = vmatpush.xpose.msra.mxu0 %v618
  %759 = vmatpush.xpose.msra.mxu0 %v615
  %760 = vmatpush.xpose.msra.mxu0 %v612
  %761 = vmatpush.xpose.msra.mxu0 %v609
  %762 = vmatpush.xpose.msra.mxu0 %v606
  %763 = vmatpush.xpose.msra.mxu0 %v603
  %764 = vmatpush.xpose.msra.mxu0 %v600
  %765 = vmatpush.xpose.msra.mxu0 %v597
  %766 = vmatmul.f32.gmra.mxu0 %v489
  %v767 = vpop.f32.mrf.mxu0
  %v768 = vadd.f32 %v447, %v767
  %769 = vmatmul.f32.gmra.mxu0 %v492
  %v770 = vpop.f32.mrf.mxu0
  %v771 = vadd.f32 %v450, %v770
  %772 = vmatmul.f32.gmra.mxu0 %v495
  %v773 = vpop.f32.mrf.mxu0
  %v774 = vadd.f32 %v453, %v773
  %775 = vmatmul.f32.gmra.mxu0 %v498
  %v776 = vpop.f32.mrf.mxu0
  %v777 = vadd.f32 %v456, %v776
  %778 = vdwg.mxu0
  %779 = vmatpush.xpose.msra.mxu0 %v690
  %780 = vmatpush.xpose.msra.mxu0 %v687
  %781 = vmatpush.xpose.msra.mxu0 %v684
  %782 = vmatpush.xpose.msra.mxu0 %v681
  %783 = vmatpush.xpose.msra.mxu0 %v678
  %784 = vmatpush.xpose.msra.mxu0 %v675
  %785 = vmatpush.xpose.msra.mxu0 %v672
  %786 = vmatpush.xpose.msra.mxu0 %v669
  %787 = vmatpush.xpose.msra.mxu0 %v666
  %788 = vmatpush.xpose.msra.mxu0 %v663
  %789 = vmatpush.xpose.msra.mxu0 %v660
  %790 = vmatpush.xpose.msra.mxu0 %v657
  %791 = vmatpush.xpose.msra.mxu0 %v654
  %792 = vmatpush.xpose.msra.mxu0 %v651
  %793 = vmatpush.xpose.msra.mxu0 %v648
  %794 = vmatpush.xpose.msra.mxu0 %v645
  %795 = vmatmul.f32.gmra.mxu0 %v489
  %v796 = vpop.f32.mrf.mxu0
  %v797 = vadd.f32 %v476, %v796
  %798 = vmatmul.f32.gmra.mxu0 %v492
  %v799 = vpop.f32.mrf.mxu0
  %v800 = vadd.f32 %v479, %v799
  %801 = vmatmul.f32.gmra.mxu0 %v495
  %v802 = vpop.f32.mrf.mxu0
  %v803 = vadd.f32 %v482, %v802
  %804 = vmatmul.f32.gmra.mxu0 %v498
  %v805 = vpop.f32.mrf.mxu0
  %v806 = vadd.f32 %v485, %v805
  %807 = vdwg.mxu0
  %809 = vset.pattern.permute.xlu0 0
  %810 = vperm.xlu0 %809, %v26
  %v811 = vpop.permute.xlu0 %810
  %814 = vset.pattern.permute.xlu0 0
  %815 = vperm.xlu0 %814, %v27
  %v816 = vpop.permute.xlu0 %815
  %819 = vset.pattern.permute.xlu0 0
  %820 = vperm.xlu0 %819, %v28
  %v821 = vpop.permute.xlu0 %820
  %824 = vset.pattern.permute.xlu0 0
  %825 = vperm.xlu0 %824, %v29
  %v826 = vpop.permute.xlu0 %825
  %v828 = vadd.f32 %v710, %v811
  %v829 = vadd.f32 %v739, %v811
  %v830 = vadd.f32 %v768, %v811
  %v831 = vadd.f32 %v797, %v811
  %v832 = vadd.f32 %v713, %v816
  %v833 = vadd.f32 %v742, %v816
  %v834 = vadd.f32 %v771, %v816
  %v835 = vadd.f32 %v800, %v816
  %v836 = vadd.f32 %v716, %v821
  %v837 = vadd.f32 %v745, %v821
  %v838 = vadd.f32 %v774, %v821
  %v839 = vadd.f32 %v803, %v821
  %v840 = vadd.f32 %v719, %v826
  %v841 = vadd.f32 %v748, %v826
  %v842 = vadd.f32 %v777, %v826
  %v843 = vadd.f32 %v806, %v826
  %v844 = vmax.f32 %v828, 0.0
  %v845 = vmax.f32 %v829, 0.0
  %v846 = vmax.f32 %v830, 0.0
  %v847 = vmax.f32 %v831, 0.0
  %v848 = vmax.f32 %v832, 0.0
  %v849 = vmax.f32 %v833, 0.0
  %v850 = vmax.f32 %v834, 0.0
  %v851 = vmax.f32 %v835, 0.0
  %v852 = vmax.f32 %v836, 0.0
  %v853 = vmax.f32 %v837, 0.0
  %v854 = vmax.f32 %v838, 0.0
  %v855 = vmax.f32 %v839, 0.0
  %v856 = vmax.f32 %v840, 0.0
  %v857 = vmax.f32 %v841, 0.0
  %v858 = vmax.f32 %v842, 0.0
  %v859 = vmax.f32 %v843, 0.0
  %v860 = vld [vmem:[%s4] sm:$0xff]
  %v861 = vld [vmem:[%s4 + $0x8] sm:$0xff]
  %v862 = vld [vmem:[%s4 + $0x10] sm:$0xff]
  %v863 = vld [vmem:[%s4 + $0x18] sm:$0xff]
  %864 = vset.pattern.permute.xlu0 1
  %865 = vperm.xlu0 %864, %v26
  %v866 = vpop.permute.xlu0 %865
  %868 = vset.pattern.permute.xlu0 1
  %869 = vperm.xlu0 %868, %v27
  %v870 = vpop.permute.xlu0 %869
  %872 = vset.pattern.permute.xlu0 1
  %873 = vperm.xlu0 %872, %v28
  %v874 = vpop.permute.xlu0 %873
  %876 = vset.pattern.permute.xlu0 1
  %877 = vperm.xlu0 %876, %v29
  %v878 = vpop.permute.xlu0 %877
  %vm880 = vcmask 261120
  %v882 = vsel %vm880, %v860, 0
  %v885 = vsel %vm880, %v861, 0
  %v888 = vsel %vm880, %v862, 0
  %v891 = vsel %vm880, %v863, 0
  %893 = vmatpush.msra.mxu0 0.0
  %894 = vmatpush.msra.mxu0 0.0
  %895 = vmatpush.msra.mxu0 0.0
  %896 = vmatpush.msra.mxu0 0.0
  %897 = vmatpush.msra.mxu0 0.0
  %898 = vmatpush.msra.mxu0 0.0
  %899 = vmatpush.msra.mxu0 0.0
  %900 = vmatpush.msra.mxu0 0.0
  %901 = vmatpush.msra.mxu0 0.0
  %902 = vmatpush.msra.mxu0 0.0
  %903 = vmatpush.msra.mxu0 0.0
  %904 = vmatpush.msra.mxu0 0.0
  %905 = vmatpush.msra.mxu0 %v856
  %906 = vmatpush.msra.mxu0 %v852
  %907 = vmatpush.msra.mxu0 %v848
  %908 = vmatpush.msra.mxu0 %v844
  %909 = vmatmul.f32.gmra.mxu0 %v882
  %v910 = vpop.f32.mrf.mxu0
  %v911 = vadd.f32 %v866, %v910
  %912 = vmatmul.f32.gmra.mxu0 %v885
  %v913 = vpop.f32.mrf.mxu0
  %v914 = vadd.f32 %v870, %v913
  %915 = vmatmul.f32.gmra.mxu0 %v888
  %v916 = vpop.f32.mrf.mxu0
  %v917 = vadd.f32 %v874, %v916
  %918 = vmatmul.f32.gmra.mxu0 %v891
  %v919 = vpop.f32.mrf.mxu0
  %v920 = vadd.f32 %v878, %v919
  %921 = vdwg.mxu0
  %922 = vmatpush.msra.mxu0 0.0
  %923 = vmatpush.msra.mxu0 0.0
  %924 = vmatpush.msra.mxu0 0.0
  %925 = vmatpush.msra.mxu0 0.0
  %926 = vmatpush.msra.mxu0 0.0
  %927 = vmatpush.msra.mxu0 0.0
  %928 = vmatpush.msra.mxu0 0.0
  %929 = vmatpush.msra.mxu0 0.0
  %930 = vmatpush.msra.mxu0 0.0
  %931 = vmatpush.msra.mxu0 0.0
  %932 = vmatpush.msra.mxu0 0.0
  %933 = vmatpush.msra.mxu0 0.0
  %934 = vmatpush.msra.mxu0 %v857
  %935 = vmatpush.msra.mxu0 %v853
  %936 = vmatpush.msra.mxu0 %v849
  %937 = vmatpush.msra.mxu0 %v845
  %938 = vmatmul.f32.gmra.mxu0 %v882
  %v939 = vpop.f32.mrf.mxu0
  %v940 = vadd.f32 %v866, %v939
  %941 = vmatmul.f32.gmra.mxu0 %v885
  %v942 = vpop.f32.mrf.mxu0
  %v943 = vadd.f32 %v870, %v942
  %944 = vmatmul.f32.gmra.mxu0 %v888
  %v945 = vpop.f32.mrf.mxu0
  %v946 = vadd.f32 %v874, %v945
  %947 = vmatmul.f32.gmra.mxu0 %v891
  %v948 = vpop.f32.mrf.mxu0
  %v949 = vadd.f32 %v878, %v948
  %950 = vdwg.mxu0
  %951 = vmatpush.msra.mxu0 0.0
  %952 = vmatpush.msra.mxu0 0.0
  %953 = vmatpush.msra.mxu0 0.0
  %954 = vmatpush.msra.mxu0 0.0
  %955 = vmatpush.msra.mxu0 0.0
  %956 = vmatpush.msra.mxu0 0.0
  %957 = vmatpush.msra.mxu0 0.0
  %958 = vmatpush.msra.mxu0 0.0
  %959 = vmatpush.msra.mxu0 0.0
  %960 = vmatpush.msra.mxu0 0.0
  %961 = vmatpush.msra.mxu0 0.0
  %962 = vmatpush.msra.mxu0 0.0
  %963 = vmatpush.msra.mxu0 %v858
  %964 = vmatpush.msra.mxu0 %v854
  %965 = vmatpush.msra.mxu0 %v850
  %966 = vmatpush.msra.mxu0 %v846
  %967 = vmatmul.f32.gmra.mxu0 %v882
  %v968 = vpop.f32.mrf.mxu0
  %v969 = vadd.f32 %v866, %v968
  %970 = vmatmul.f32.gmra.mxu0 %v885
  %v971 = vpop.f32.mrf.mxu0
  %v972 = vadd.f32 %v870, %v971
  %973 = vmatmul.f32.gmra.mxu0 %v888
  %v974 = vpop.f32.mrf.mxu0
  %v975 = vadd.f32 %v874, %v974
  %976 = vmatmul.f32.gmra.mxu0 %v891
  %v977 = vpop.f32.mrf.mxu0
  %v978 = vadd.f32 %v878, %v977
  %979 = vdwg.mxu0
  %980 = vmatpush.msra.mxu0 0.0
  %981 = vmatpush.msra.mxu0 0.0
  %982 = vmatpush.msra.mxu0 0.0
  %983 = vmatpush.msra.mxu0 0.0
  %984 = vmatpush.msra.mxu0 0.0
  %985 = vmatpush.msra.mxu0 0.0
  %986 = vmatpush.msra.mxu0 0.0
  %987 = vmatpush.msra.mxu0 0.0
  %988 = vmatpush.msra.mxu0 0.0
  %989 = vmatpush.msra.mxu0 0.0
  %990 = vmatpush.msra.mxu0 0.0
  %991 = vmatpush.msra.mxu0 0.0
  %992 = vmatpush.msra.mxu0 %v859
  %993 = vmatpush.msra.mxu0 %v855
  %994 = vmatpush.msra.mxu0 %v851
  %995 = vmatpush.msra.mxu0 %v847
  %996 = vmatmul.f32.gmra.mxu0 %v882
  %v997 = vpop.f32.mrf.mxu0
  %v998 = vadd.f32 %v866, %v997
  %999 = vmatmul.f32.gmra.mxu0 %v885
  %v1000 = vpop.f32.mrf.mxu0
  %v1001 = vadd.f32 %v870, %v1000
  %1002 = vmatmul.f32.gmra.mxu0 %v888
  %v1003 = vpop.f32.mrf.mxu0
  %v1004 = vadd.f32 %v874, %v1003
  %1005 = vmatmul.f32.gmra.mxu0 %v891
  %v1006 = vpop.f32.mrf.mxu0
  %v1007 = vadd.f32 %v878, %v1006
  %1008 = vdwg.mxu0
  %v1009 = vmax.f32 %v911, 0.0
  %v1010 = vmax.f32 %v940, 0.0
  %v1011 = vmax.f32 %v969, 0.0
  %v1012 = vmax.f32 %v998, 0.0
  %v1013 = vmax.f32 %v914, 0.0
  %v1014 = vmax.f32 %v943, 0.0
  %v1015 = vmax.f32 %v972, 0.0
  %v1016 = vmax.f32 %v1001, 0.0
  %v1017 = vmax.f32 %v917, 0.0
  %v1018 = vmax.f32 %v946, 0.0
  %v1019 = vmax.f32 %v975, 0.0
  %v1020 = vmax.f32 %v1004, 0.0
  %v1021 = vmax.f32 %v920, 0.0
  %v1022 = vmax.f32 %v949, 0.0
  %v1023 = vmax.f32 %v978, 0.0
  %v1024 = vmax.f32 %v1007, 0.0
  %v1025 = vld [vmem:[%s5] sm:$0xff]
  %1026 = vset.pattern.permute.xlu0 2
  %1027 = vperm.xlu0 %1026, %v26
  %v1028 = vpop.permute.xlu0 %1027
  %v1031 = vsel %vm880, %v1025, 0
  %1033 = vmatpush.msra.mxu0 0.0
  %1034 = vmatpush.msra.mxu0 0.0
  %1035 = vmatpush.msra.mxu0 0.0
  %1036 = vmatpush.msra.mxu0 0.0
  %1037 = vmatpush.msra.mxu0 0.0
  %1038 = vmatpush.msra.mxu0 0.0
  %1039 = vmatpush.msra.mxu0 0.0
  %1040 = vmatpush.msra.mxu0 0.0
  %1041 = vmatpush.msra.mxu0 0.0
  %1042 = vmatpush.msra.mxu0 0.0
  %1043 = vmatpush.msra.mxu0 0.0
  %1044 = vmatpush.msra.mxu0 0.0
  %1045 = vmatpush.msra.mxu0 %v1021
  %1046 = vmatpush.msra.mxu0 %v1017
  %1047 = vmatpush.msra.mxu0 %v1013
  %1048 = vmatpush.msra.mxu0 %v1009
  %1049 = vmatmul.f32.gmra.mxu0 %v1031
  %v1050 = vpop.f32.mrf.mxu0
  %v1051 = vadd.f32 %v1028, %v1050
  %1052 = vdwg.mxu0
  %1053 = vmatpush.msra.mxu0 0.0
  %1054 = vmatpush.msra.mxu0 0.0
  %1055 = vmatpush.msra.mxu0 0.0
  %1056 = vmatpush.msra.mxu0 0.0
  %1057 = vmatpush.msra.mxu0 0.0
  %1058 = vmatpush.msra.mxu0 0.0
  %1059 = vmatpush.msra.mxu0 0.0
  %1060 = vmatpush.msra.mxu0 0.0
  %1061 = vmatpush.msra.mxu0 0.0
  %1062 = vmatpush.msra.mxu0 0.0
  %1063 = vmatpush.msra.mxu0 0.0
  %1064 = vmatpush.msra.mxu0 0.0
  %1065 = vmatpush.msra.mxu0 %v1022
  %1066 = vmatpush.msra.mxu0 %v1018
  %1067 = vmatpush.msra.mxu0 %v1014
  %1068 = vmatpush.msra.mxu0 %v1010
  %1069 = vmatmul.f32.gmra.mxu0 %v1031
  %v1070 = vpop.f32.mrf.mxu0
  %v1071 = vadd.f32 %v1028, %v1070
  %1072 = vdwg.mxu0
  %1073 = vmatpush.msra.mxu0 0.0
  %1074 = vmatpush.msra.mxu0 0.0
  %1075 = vmatpush.msra.mxu0 0.0
  %1076 = vmatpush.msra.mxu0 0.0
  %1077 = vmatpush.msra.mxu0 0.0
  %1078 = vmatpush.msra.mxu0 0.0
  %1079 = vmatpush.msra.mxu0 0.0
  %1080 = vmatpush.msra.mxu0 0.0
  %1081 = vmatpush.msra.mxu0 0.0
  %1082 = vmatpush.msra.mxu0 0.0
  %1083 = vmatpush.msra.mxu0 0.0
  %1084 = vmatpush.msra.mxu0 0.0
  %1085 = vmatpush.msra.mxu0 %v1023
  %1086 = vmatpush.msra.mxu0 %v1019
  %1087 = vmatpush.msra.mxu0 %v1015
  %1088 = vmatpush.msra.mxu0 %v1011
  %1089 = vmatmul.f32.gmra.mxu0 %v1031
  %v1090 = vpop.f32.mrf.mxu0
  %v1091 = vadd.f32 %v1028, %v1090
  %1092 = vdwg.mxu0
  %1093 = vmatpush.msra.mxu0 0.0
  %1094 = vmatpush.msra.mxu0 0.0
  %1095 = vmatpush.msra.mxu0 0.0
  %1096 = vmatpush.msra.mxu0 0.0
  %1097 = vmatpush.msra.mxu0 0.0
  %1098 = vmatpush.msra.mxu0 0.0
  %1099 = vmatpush.msra.mxu0 0.0
  %1100 = vmatpush.msra.mxu0 0.0
  %1101 = vmatpush.msra.mxu0 0.0
  %1102 = vmatpush.msra.mxu0 0.0
  %1103 = vmatpush.msra.mxu0 0.0
  %1104 = vmatpush.msra.mxu0 0.0
  %1105 = vmatpush.msra.mxu0 %v1024
  %1106 = vmatpush.msra.mxu0 %v1020
  %1107 = vmatpush.msra.mxu0 %v1016
  %1108 = vmatpush.msra.mxu0 %v1012
  %1109 = vmatmul.f32.gmra.mxu0 %v1031
  %v1110 = vpop.f32.mrf.mxu0
  %v1111 = vadd.f32 %v1028, %v1110
  %1112 = vdwg.mxu0
  %1113 = vxpose.xlu0.b32.start [1/16] %v1051, 128
  %1114 = vxpose.xlu0.b32.cont [2/16] 0.0, 128
  %1115 = vxpose.xlu0.b32.cont [3/16] 0.0, 128
  %1116 = vxpose.xlu0.b32.cont [4/16] 0.0, 128
  %1117 = vxpose.xlu0.b32.cont [5/16] 0.0, 128
  %1118 = vxpose.xlu0.b32.cont [6/16] 0.0, 128
  %1119 = vxpose.xlu0.b32.cont [7/16] 0.0, 128
  %1120 = vxpose.xlu0.b32.cont [8/16] 0.0, 128
  %1121 = vxpose.xlu0.b32.cont [9/16] 0.0, 128
  %1122 = vxpose.xlu0.b32.cont [10/16] 0.0, 128
  %1123 = vxpose.xlu0.b32.cont [11/16] 0.0, 128
  %1124 = vxpose.xlu0.b32.cont [12/16] 0.0, 128
  %1125 = vxpose.xlu0.b32.cont [13/16] 0.0, 128
  %1126 = vxpose.xlu0.b32.cont [14/16] 0.0, 128
  %1127 = vxpose.xlu0.b32.cont [15/16] 0.0, 128
  %1128 = vxpose.xlu0.b32.end [16/16] 0.0, 128
  %v1129 = vpop.trf.xlu0
  %v1130 = vpop.trf.xlu0
  %v1131 = vpop.trf.xlu0
  %v1132 = vpop.trf.xlu0
  %v1133 = vpop.trf.xlu0
  %v1134 = vpop.trf.xlu0
  %v1135 = vpop.trf.xlu0
  %v1136 = vpop.trf.xlu0
  %v1137 = vpop.trf.xlu0
  %v1138 = vpop.trf.xlu0
  %v1139 = vpop.trf.xlu0
  %v1140 = vpop.trf.xlu0
  %v1141 = vpop.trf.xlu0
  %v1142 = vpop.trf.xlu0
  %v1143 = vpop.trf.xlu0
  %v1144 = vpop.trf.xlu0
  %1145 = vxpose.xlu0.b32.start [1/16] %v1071, 128
  %1146 = vxpose.xlu0.b32.cont [2/16] 0.0, 128
  %1147 = vxpose.xlu0.b32.cont [3/16] 0.0, 128
  %1148 = vxpose.xlu0.b32.cont [4/16] 0.0, 128
  %1149 = vxpose.xlu0.b32.cont [5/16] 0.0, 128
  %1150 = vxpose.xlu0.b32.cont [6/16] 0.0, 128
  %1151 = vxpose.xlu0.b32.cont [7/16] 0.0, 128
  %1152 = vxpose.xlu0.b32.cont [8/16] 0.0, 128
  %1153 = vxpose.xlu0.b32.cont [9/16] 0.0, 128
  %1154 = vxpose.xlu0.b32.cont [10/16] 0.0, 128
  %1155 = vxpose.xlu0.b32.cont [11/16] 0.0, 128
  %1156 = vxpose.xlu0.b32.cont [12/16] 0.0, 128
  %1157 = vxpose.xlu0.b32.cont [13/16] 0.0, 128
  %1158 = vxpose.xlu0.b32.cont [14/16] 0.0, 128
  %1159 = vxpose.xlu0.b32.cont [15/16] 0.0, 128
  %1160 = vxpose.xlu0.b32.end [16/16] 0.0, 128
  %v1161 = vpop.trf.xlu0
  %v1162 = vpop.trf.xlu0
  %v1163 = vpop.trf.xlu0
  %v1164 = vpop.trf.xlu0
  %v1165 = vpop.trf.xlu0
  %v1166 = vpop.trf.xlu0
  %v1167 = vpop.trf.xlu0
  %v1168 = vpop.trf.xlu0
  %v1169 = vpop.trf.xlu0
  %v1170 = vpop.trf.xlu0
  %v1171 = vpop.trf.xlu0
  %v1172 = vpop.trf.xlu0
  %v1173 = vpop.trf.xlu0
  %v1174 = vpop.trf.xlu0
  %v1175 = vpop.trf.xlu0
  %v1176 = vpop.trf.xlu0
  %1177 = vxpose.xlu0.b32.start [1/16] %v1091, 128
  %1178 = vxpose.xlu0.b32.cont [2/16] 0.0, 128
  %1179 = vxpose.xlu0.b32.cont [3/16] 0.0, 128
  %1180 = vxpose.xlu0.b32.cont [4/16] 0.0, 128
  %1181 = vxpose.xlu0.b32.cont [5/16] 0.0, 128
  %1182 = vxpose.xlu0.b32.cont [6/16] 0.0, 128
  %1183 = vxpose.xlu0.b32.cont [7/16] 0.0, 128
  %1184 = vxpose.xlu0.b32.cont [8/16] 0.0, 128
  %1185 = vxpose.xlu0.b32.cont [9/16] 0.0, 128
  %1186 = vxpose.xlu0.b32.cont [10/16] 0.0, 128
  %1187 = vxpose.xlu0.b32.cont [11/16] 0.0, 128
  %1188 = vxpose.xlu0.b32.cont [12/16] 0.0, 128
  %1189 = vxpose.xlu0.b32.cont [13/16] 0.0, 128
  %1190 = vxpose.xlu0.b32.cont [14/16] 0.0, 128
  %1191 = vxpose.xlu0.b32.cont [15/16] 0.0, 128
  %1192 = vxpose.xlu0.b32.end [16/16] 0.0, 128
  %v1193 = vpop.trf.xlu0
  %v1194 = vpop.trf.xlu0
  %v1195 = vpop.trf.xlu0
  %v1196 = vpop.trf.xlu0
  %v1197 = vpop.trf.xlu0
  %v1198 = vpop.trf.xlu0
  %v1199 = vpop.trf.xlu0
  %v1200 = vpop.trf.xlu0
  %v1201 = vpop.trf.xlu0
  %v1202 = vpop.trf.xlu0
  %v1203 = vpop.trf.xlu0
  %v1204 = vpop.trf.xlu0
  %v1205 = vpop.trf.xlu0
  %v1206 = vpop.trf.xlu0
  %v1207 = vpop.trf.xlu0
  %v1208 = vpop.trf.xlu0
  %1209 = vxpose.xlu0.b32.start [1/16] %v1111, 128
  %1210 = vxpose.xlu0.b32.cont [2/16] 0.0, 128
  %1211 = vxpose.xlu0.b32.cont [3/16] 0.0, 128
  %1212 = vxpose.xlu0.b32.cont [4/16] 0.0, 128
  %1213 = vxpose.xlu0.b32.cont [5/16] 0.0, 128
  %1214 = vxpose.xlu0.b32.cont [6/16] 0.0, 128
  %1215 = vxpose.xlu0.b32.cont [7/16] 0.0, 128
  %1216 = vxpose.xlu0.b32.cont [8/16] 0.0, 128
  %1217 = vxpose.xlu0.b32.cont [9/16] 0.0, 128
  %1218 = vxpose.xlu0.b32.cont [10/16] 0.0, 128
  %1219 = vxpose.xlu0.b32.cont [11/16] 0.0, 128
  %1220 = vxpose.xlu0.b32.cont [12/16] 0.0, 128
  %1221 = vxpose.xlu0.b32.cont [13/16] 0.0, 128
  %1222 = vxpose.xlu0.b32.cont [14/16] 0.0, 128
  %1223 = vxpose.xlu0.b32.cont [15/16] 0.0, 128
  %1224 = vxpose.xlu0.b32.end [16/16] 0.0, 128
  %v1225 = vpop.trf.xlu0
  %v1226 = vpop.trf.xlu0
  %v1227 = vpop.trf.xlu0
  %v1228 = vpop.trf.xlu0
  %v1229 = vpop.trf.xlu0
  %v1230 = vpop.trf.xlu0
  %v1231 = vpop.trf.xlu0
  %v1232 = vpop.trf.xlu0
  %v1233 = vpop.trf.xlu0
  %v1234 = vpop.trf.xlu0
  %v1235 = vpop.trf.xlu0
  %v1236 = vpop.trf.xlu0
  %v1237 = vpop.trf.xlu0
  %v1238 = vpop.trf.xlu0
  %v1239 = vpop.trf.xlu0
  %v1240 = vpop.trf.xlu0
  %1241 = vst.msk [vmem:[%s7] sm:$0xff] %vm166, %v1129
  %1242 = vst.msk [vmem:[%s7 + $0x8] sm:$0xff] %vm166, %v1130
  %1243 = vst.msk [vmem:[%s7 + $0x10] sm:$0xff] %vm166, %v1131
  %1244 = vst.msk [vmem:[%s7 + $0x18] sm:$0xff] %vm166, %v1132
  %1245 = vst.msk [vmem:[%s7 + $0x20] sm:$0xff] %vm166, %v1133
  %1246 = vst.msk [vmem:[%s7 + $0x28] sm:$0xff] %vm166, %v1134
  %1247 = vst.msk [vmem:[%s7 + $0x30] sm:$0xff] %vm166, %v1135
  %1248 = vst.msk [vmem:[%s7 + $0x38] sm:$0xff] %vm166, %v1136
  %1249 = vst.msk [vmem:[%s7 + $0x40] sm:$0xff] %vm166, %v1137
  %1250 = vst.msk [vmem:[%s7 + $0x48] sm:$0xff] %vm166, %v1138
  %1251 = vst.msk [vmem:[%s7 + $0x50] sm:$0xff] %vm166, %v1139
  %1252 = vst.msk [vmem:[%s7 + $0x58] sm:$0xff] %vm166, %v1140
  %1253 = vst.msk [vmem:[%s7 + $0x60] sm:$0xff] %vm166, %v1141
  %1254 = vst.msk [vmem:[%s7 + $0x68] sm:$0xff] %vm166, %v1142
  %1255 = vst.msk [vmem:[%s7 + $0x70] sm:$0xff] %vm166, %v1143
  %1256 = vst.msk [vmem:[%s7 + $0x78] sm:$0xff] %vm166, %v1144
  %1257 = vst.msk [vmem:[%s7 + $0x80] sm:$0xff] %vm166, %v1161
  %1258 = vst.msk [vmem:[%s7 + $0x88] sm:$0xff] %vm166, %v1162
  %1259 = vst.msk [vmem:[%s7 + $0x90] sm:$0xff] %vm166, %v1163
  %1260 = vst.msk [vmem:[%s7 + $0x98] sm:$0xff] %vm166, %v1164
  %1261 = vst.msk [vmem:[%s7 + $0xa0] sm:$0xff] %vm166, %v1165
  %1262 = vst.msk [vmem:[%s7 + $0xa8] sm:$0xff] %vm166, %v1166
  %1263 = vst.msk [vmem:[%s7 + $0xb0] sm:$0xff] %vm166, %v1167
  %1264 = vst.msk [vmem:[%s7 + $0xb8] sm:$0xff] %vm166, %v1168
  %1265 = vst.msk [vmem:[%s7 + $0xc0] sm:$0xff] %vm166, %v1169
  %1266 = vst.msk [vmem:[%s7 + $0xc8] sm:$0xff] %vm166, %v1170
  %1267 = vst.msk [vmem:[%s7 + $0xd0] sm:$0xff] %vm166, %v1171
  %1268 = vst.msk [vmem:[%s7 + $0xd8] sm:$0xff] %vm166, %v1172
  %1269 = vst.msk [vmem:[%s7 + $0xe0] sm:$0xff] %vm166, %v1173
  %1270 = vst.msk [vmem:[%s7 + $0xe8] sm:$0xff] %vm166, %v1174
  %1271 = vst.msk [vmem:[%s7 + $0xf0] sm:$0xff] %vm166, %v1175
  %1272 = vst.msk [vmem:[%s7 + $0xf8] sm:$0xff] %vm166, %v1176
  %1273 = vst.msk [vmem:[%s7 + $0x100] sm:$0xff] %vm166, %v1193
  %1274 = vst.msk [vmem:[%s7 + $0x108] sm:$0xff] %vm166, %v1194
  %1275 = vst.msk [vmem:[%s7 + $0x110] sm:$0xff] %vm166, %v1195
  %1276 = vst.msk [vmem:[%s7 + $0x118] sm:$0xff] %vm166, %v1196
  %1277 = vst.msk [vmem:[%s7 + $0x120] sm:$0xff] %vm166, %v1197
  %1278 = vst.msk [vmem:[%s7 + $0x128] sm:$0xff] %vm166, %v1198
  %1279 = vst.msk [vmem:[%s7 + $0x130] sm:$0xff] %vm166, %v1199
  %1280 = vst.msk [vmem:[%s7 + $0x138] sm:$0xff] %vm166, %v1200
  %1281 = vst.msk [vmem:[%s7 + $0x140] sm:$0xff] %vm166, %v1201
  %1282 = vst.msk [vmem:[%s7 + $0x148] sm:$0xff] %vm166, %v1202
  %1283 = vst.msk [vmem:[%s7 + $0x150] sm:$0xff] %vm166, %v1203
  %1284 = vst.msk [vmem:[%s7 + $0x158] sm:$0xff] %vm166, %v1204
  %1285 = vst.msk [vmem:[%s7 + $0x160] sm:$0xff] %vm166, %v1205
  %1286 = vst.msk [vmem:[%s7 + $0x168] sm:$0xff] %vm166, %v1206
  %1287 = vst.msk [vmem:[%s7 + $0x170] sm:$0xff] %vm166, %v1207
  %1288 = vst.msk [vmem:[%s7 + $0x178] sm:$0xff] %vm166, %v1208
  %1289 = vst.msk [vmem:[%s7 + $0x180] sm:$0xff] %vm166, %v1225
  %1290 = vst.msk [vmem:[%s7 + $0x188] sm:$0xff] %vm166, %v1226
  %1291 = vst.msk [vmem:[%s7 + $0x190] sm:$0xff] %vm166, %v1227
  %1292 = vst.msk [vmem:[%s7 + $0x198] sm:$0xff] %vm166, %v1228
  %1293 = vst.msk [vmem:[%s7 + $0x1a0] sm:$0xff] %vm166, %v1229
  %1294 = vst.msk [vmem:[%s7 + $0x1a8] sm:$0xff] %vm166, %v1230
  %1295 = vst.msk [vmem:[%s7 + $0x1b0] sm:$0xff] %vm166, %v1231
  %1296 = vst.msk [vmem:[%s7 + $0x1b8] sm:$0xff] %vm166, %v1232
  %1297 = vst.msk [vmem:[%s7 + $0x1c0] sm:$0xff] %vm166, %v1233
  %1298 = vst.msk [vmem:[%s7 + $0x1c8] sm:$0xff] %vm166, %v1234
  %1299 = vst.msk [vmem:[%s7 + $0x1d0] sm:$0xff] %vm166, %v1235
  %1300 = vst.msk [vmem:[%s7 + $0x1d8] sm:$0xff] %vm166, %v1236
  %1301 = vst.msk [vmem:[%s7 + $0x1e0] sm:$0xff] %vm166, %v1237
  %1302 = vst.msk [vmem:[%s7 + $0x1e8] sm:$0xff] %vm166, %v1238
  %1303 = vst.msk [vmem:[%s7 + $0x1f0] sm:$0xff] %vm166, %v1239
  %1304 = vst.msk [vmem:[%s7 + $0x1f8] sm:$0xff] %vm166, %v1240
  // Predicated region
  $region30: #{tpu_custom_call.1} parent=0 // pred_check
    _
  $region31: #{tpu_custom_call.1} parent=0 // pred_check_branch
    %1306 = sbr.rel (0) target = $region33
  $region32: #{tpu_custom_call.1} parent=0 // pred_region
    _
  $region33: #{tpu_custom_call.1} parent=0 // pred_fallthru
    _
  // Predicated region
  $region34: #{tpu_custom_call.1} parent=0 // pred_check
    _
  $region35: #{tpu_custom_call.1} parent=0 // pred_check_branch
    %1308 = sbr.rel (0) target = $region37
  $region36: #{tpu_custom_call.1} parent=0 // pred_region
    _
  $region37: #{tpu_custom_call.1} parent=0 // pred_fallthru
    _

</llo_original>
